<compile_context>
chip_gen: v7x
topology: tpu7x:2x2x1
jax: 0.10.0
libtpu: 0.0.40
codegen_flags: <defaults>
</compile_context>

<pallas_src>
import functools

import jax
import jax.numpy as jnp
import numpy as np
from jax.experimental import pallas as pl
from jax.experimental.pallas import tpu as pltpu


_LANES = 128       # lane width of the packed parameter slab and output slab
_BIAS_ROWS = 8     # each bias occupies one (8, 128) tile, replicated over rows


def _round8(n: int) -> int:
    return ((n + 7) // 8) * 8


# ----------------------------- slab layout -----------------------------------

def _slab_entries(input_dim, hidden_dim, latent_dim, output_dim):
    """Ordered (name, n_rows) blocks of the packed parameter slab."""
    ip = _round8(input_dim)
    hp = _round8(hidden_dim)
    lp = _round8(latent_dim)
    h2p = _round8(2 * hidden_dim)
    o2p = _round8(2 * output_dim)
    return (
        ("e0w", ip), ("e0b", _BIAS_ROWS),
        ("e1w", hp), ("e1b", _BIAS_ROWS),
        ("e2w", hp), ("e2b", _BIAS_ROWS),
        ("p01w", lp), ("p01b", _BIAS_ROWS),
        ("p1w", h2p), ("p1b", _BIAS_ROWS),
        ("p2w", h2p), ("p2b", _BIAS_ROWS),
        ("dzw", lp), ("dybw", o2p), ("d0b", _BIAS_ROWS),
        ("d1w", hp), ("d1b", _BIAS_ROWS),
        ("d2w", hp), ("d2b", _BIAS_ROWS),
    )


def _make_layout(input_dim, hidden_dim, latent_dim, output_dim):
    lay, off = {}, 0
    for name, rows in _slab_entries(input_dim, hidden_dim, latent_dim, output_dim):
        lay[name] = (off, rows)
        off += rows
    return lay, off


# ------------------------------ fused kernel ---------------------------------

def _fused_forward_kernel(x_ref, slab_ref, out_ref, *, lay, hp, h2p, lp, o2p):
    """Whole Autoencoder forward on one (B, 128) lane-dense output slab."""

    def dot(a, b):
        return jnp.dot(a, b, preferred_element_type=jnp.float32)

    def w(name):
        # Static, 8-row-aligned, full-128-lane view of the parameter slab.
        off, rows = lay[name]
        return slab_ref[off:off + rows, :]

    nbatch = x_ref.shape[0]

    def bias(name):
        off, rows = lay[name]
        blk = slab_ref[off:off + rows, :]          # bias replicated over rows
        return blk if rows == nbatch else blk[:1, :]

    x = x_ref[...]                                  # (B, in_pad)

    # ---- encoder (Dropout == identity in eval mode) ----
    h = jnp.maximum(dot(x, w("e0w")) + bias("e0b"), 0.0)[:, :hp]
    h = jnp.maximum(dot(h, w("e1w")) + bias("e1b"), 0.0)[:, :hp]
    z = (dot(h, w("e2w")) + bias("e2b"))[:, :lp]

    # ---- both predictor towers in one matmul chain ----
    p = jnp.maximum(dot(z, w("p01w")) + bias("p01b"), 0.0)[:, :h2p]
    p = jnp.maximum(dot(p, w("p1w")) + bias("p1b"), 0.0)[:, :h2p]
    y_both_full = dot(p, w("p2w")) + bias("p2b")    # lanes [0, 2*out): y | y2
    yb = y_both_full[:, :o2p]

    # ---- decoder: concat folded into split-K matmuls, y_both kept fused ----
    d = dot(z, w("dzw")) + dot(yb, w("dybw")) + bias("d0b")
    d = jnp.maximum(d, 0.0)[:, :hp]
    d = jnp.maximum(dot(d, w("d1w")) + bias("d1b"), 0.0)[:, :hp]
    x2_full = dot(d, w("d2w")) + bias("d2b")        # lanes [o2p, o2p+input_dim)

    # Packed lane-dense output [y_pred | y2_pred | x2_pred | zeros]: the two
    # partial slabs occupy disjoint lane ranges (enforced at pack time), so a
    # single VPU add + one unmasked full-width store finishes the kernel.
    out_ref[...] = y_both_full + x2_full


# ------------------------------ host wrapper ---------------------------------

def autoencoder_forward(packed, x, *, input_dim, hidden_dim, latent_dim,
                        output_dim):
    """Single fused gridless pallas_call for the whole Autoencoder forward."""
    slab = packed["slab"]
    reg_loss = packed["reg_loss"]        # hoisted out of the kernel (x-independent)

    ip = _round8(input_dim)
    hp = _round8(hidden_dim)
    lp = _round8(latent_dim)
    h2p = _round8(2 * hidden_dim)
    o2p = _round8(2 * output_dim)
    assert max(h2p, o2p + ip) <= _LANES, "feature widths exceed one 128-lane slab"

    lay, _ = _make_layout(input_dim, hidden_dim, latent_dim, output_dim)

    batch = x.shape[0]
    bp = _round8(batch)
    x = x.astype(jnp.float32)
    if (batch, x.shape[1]) != (bp, ip):
        x = jnp.pad(x, ((0, bp - batch), (0, ip - x.shape[1])))

    kernel = functools.partial(
        _fused_forward_kernel, lay=lay, hp=hp, h2p=h2p, lp=lp, o2p=o2p)

    flops = 2 * bp * (
        input_dim * hidden_dim + hidden_dim * hidden_dim
        + hidden_dim * latent_dim
        + latent_dim * 2 * hidden_dim + (2 * hidden_dim) ** 2
        + 2 * hidden_dim * 2 * output_dim
        + latent_dim * hidden_dim + 2 * output_dim * hidden_dim
        + hidden_dim * hidden_dim + hidden_dim * input_dim)
    bytes_accessed = 4 * (x.size + slab.size + bp * _LANES)

    out = pl.pallas_call(
        kernel,
        out_shape=jax.ShapeDtypeStruct((bp, _LANES), jnp.float32),
        in_specs=[pl.BlockSpec(memory_space=pltpu.MemorySpace.VMEM),
                  pl.BlockSpec(memory_space=pltpu.MemorySpace.VMEM)],
        out_specs=pl.BlockSpec(memory_space=pltpu.MemorySpace.VMEM),
        cost_estimate=pl.CostEstimate(flops=flops, transcendentals=0,
                                      bytes_accessed=bytes_accessed),
    )(x, slab)

    y_pred = out[:batch, :output_dim]
    y2_pred = out[:batch, output_dim:2 * output_dim]
    x2_pred = out[:batch, o2p:o2p + input_dim]
    return x2_pred, y_pred, y2_pred, reg_loss


# ---------------------------- parameter helpers -------------------------------

def init_linear_params(key, fan_in, fan_out):
    """Mimics nn.Linear's default U(-1/sqrt(in), 1/sqrt(in)); bias kept (1, N)."""
    kw, kb = jax.random.split(key)
    bound = 1.0 / float(np.sqrt(fan_in))
    w = jax.random.uniform(kw, (fan_in, fan_out), jnp.float32, -bound, bound)
    b = jax.random.uniform(kb, (1, fan_out), jnp.float32, -bound, bound)
    return w, b


def init_autoencoder_params(key, input_dim, hidden_dim, latent_dim, output_dim):
    keys = jax.random.split(key, 14)
    p = {}
    p["enc0"] = init_linear_params(keys[0], input_dim, hidden_dim)
    p["enc1"] = init_linear_params(keys[1], hidden_dim, hidden_dim)
    p["enc2"] = init_linear_params(keys[2], hidden_dim, latent_dim)
    dec_in = latent_dim + 2 * output_dim
    p["dec0"] = init_linear_params(keys[3], dec_in, hidden_dim)
    p["dec1"] = init_linear_params(keys[4], hidden_dim, hidden_dim)
    p["dec2"] = init_linear_params(keys[5], hidden_dim, input_dim)
    p["pred0"] = init_linear_params(keys[6], latent_dim, hidden_dim)
    p["pred1"] = init_linear_params(keys[7], hidden_dim, hidden_dim)
    p["pred2"] = init_linear_params(keys[8], hidden_dim, output_dim)
    p["pred2_0"] = init_linear_params(keys[9], latent_dim, hidden_dim)
    p["pred2_1"] = init_linear_params(keys[10], hidden_dim, hidden_dim)
    p["pred2_2"] = init_linear_params(keys[11], hidden_dim, output_dim)
    p["reg0"] = init_linear_params(keys[12], hidden_dim, hidden_dim)
    p["reg1"] = init_linear_params(keys[13], latent_dim, latent_dim)
    return p


def _block_diag(a, b):
    za = jnp.zeros((a.shape[0], b.shape[1]), a.dtype)
    zb = jnp.zeros((b.shape[0], a.shape[1]), b.dtype)
    return jnp.concatenate(
        [jnp.concatenate([a, za], axis=1),
         jnp.concatenate([zb, b], axis=1)], axis=0)


def pack_params(p, *, input_dim, hidden_dim, latent_dim, output_dim, l2_reg):
    """One-time re-layout of per-layer params into one padded (rows, 128) slab."""
    lay, total_rows = _make_layout(input_dim, hidden_dim, latent_dim, output_dim)
    rows = dict(_slab_entries(input_dim, hidden_dim, latent_dim, output_dim))
    o2p = _round8(2 * output_dim)

    def pad_w(arr, nrows, col_off=0):
        blk = jnp.zeros((nrows, _LANES), jnp.float32)
        return blk.at[:arr.shape[0], col_off:col_off + arr.shape[1]].set(
            arr.astype(jnp.float32))

    def pad_b(b, col_off=0):
        b = b.reshape(1, -1).astype(jnp.float32)
        blk = jnp.zeros((_BIAS_ROWS, _LANES), jnp.float32)
        return blk.at[:, col_off:col_off + b.shape[1]].set(
            jnp.broadcast_to(b, (_BIAS_ROWS, b.shape[1])))

    e0w, e0b = p["enc0"]; e1w, e1b = p["enc1"]; e2w, e2b = p["enc2"]

    # merge the two predictor towers
    p01w = jnp.concatenate([p["pred0"][0], p["pred2_0"][0]], axis=1)
    p01b = jnp.concatenate([p["pred0"][1], p["pred2_0"][1]], axis=1)
    p1w = _block_diag(p["pred1"][0], p["pred2_1"][0])
    p1b = jnp.concatenate([p["pred1"][1], p["pred2_1"][1]], axis=1)
    p2w = _block_diag(p["pred2"][0], p["pred2_2"][0])
    p2b = jnp.concatenate([p["pred2"][1], p["pred2_2"][1]], axis=1)

    # decoder layer-0 weight split row-wise; y/y2 rows kept as ONE block
    d0w, d0b = p["dec0"]
    dzw = d0w[:latent_dim]
    dybw = d0w[latent_dim:]
    d1w, d1b = p["dec1"]; d2w, d2b = p["dec2"]

    blocks = {
        "e0w": pad_w(e0w, rows["e0w"]), "e0b": pad_b(e0b),
        "e1w": pad_w(e1w, rows["e1w"]), "e1b": pad_b(e1b),
        "e2w": pad_w(e2w, rows["e2w"]), "e2b": pad_b(e2b),
        "p01w": pad_w(p01w, rows["p01w"]), "p01b": pad_b(p01b),
        "p1w": pad_w(p1w, rows["p1w"]), "p1b": pad_b(p1b),
        "p2w": pad_w(p2w, rows["p2w"]), "p2b": pad_b(p2b),
        "dzw": pad_w(dzw, rows["dzw"]), "dybw": pad_w(dybw, rows["dybw"]),
        "d0b": pad_b(d0b),
        "d1w": pad_w(d1w, rows["d1w"]), "d1b": pad_b(d1b),
        # x2_pred columns placed at lane offset o2p so the kernel's final add
        # yields the packed [y | y2 | x2 | 0] slab with no in-kernel shuffle.
        "d2w": pad_w(d2w, rows["d2w"], col_off=o2p),
        "d2b": pad_b(d2b, col_off=o2p),
    }
    slab = jnp.concatenate(
        [blocks[name] for name, _ in
         _slab_entries(input_dim, hidden_dim, latent_dim, output_dim)], axis=0)
    assert slab.shape == (total_rows, _LANES)

    # reg_loss hoisted out of the kernel (input-independent Frobenius norms;
    # transpose-invariant so the (in,out) storage doesn't matter).
    reg_loss = (jnp.float32(l2_reg)
                * (jnp.linalg.norm(p["reg0"][0]) + jnp.linalg.norm(p["reg1"][0])))
    return {"slab": slab, "reg_loss": reg_loss.astype(jnp.float32)}


# --------------------------- plain-JAX reference ------------------------------

def reference_forward(p, x, l2_reg):
    def lin(h, wb, relu=False):
        w, b = wb
        y = h @ w + b
        return jnp.maximum(y, 0.0) if relu else y
    h = lin(x, p["enc0"], True)
    h = lin(h, p["enc1"], True)
    z = lin(h, p["enc2"])
    h1 = lin(z, p["pred0"], True)
    h1 = lin(h1, p["pred1"], True)
    y1 = lin(h1, p["pred2"])
    h2 = lin(z, p["pred2_0"], True)
    h2 = lin(h2, p["pred2_1"], True)
    y2 = lin(h2, p["pred2_2"])
    cat = jnp.concatenate([z, y1, y2], axis=1)
    d = lin(cat, p["dec0"], True)
    d = lin(d, p["dec1"], True)
    x2 = lin(d, p["dec2"])
    reg = l2_reg * (jnp.linalg.norm(p["reg0"][0]) + jnp.linalg.norm(p["reg1"][0]))
    return x2, y1, y2, reg


# ----------------------------------- main --------------------------------------

if __name__ == "__main__":
    # small shapes consistent with the module's forward
    batch = 8
    input_dim = 16
    hidden_dim = 32
    latent_dim = 8
    output_dim = 4
    dropout_rate = 0.1  # eval-mode -> identity
    l2_reg = 1e-4

    key = jax.random.PRNGKey(0)
    k_params, k_x = jax.random.split(key)
    params = init_autoencoder_params(
        k_params, input_dim, hidden_dim, latent_dim, output_dim)
    packed = pack_params(params, input_dim=input_dim, hidden_dim=hidden_dim,
                         latent_dim=latent_dim, output_dim=output_dim,
                         l2_reg=l2_reg)
    x = jax.random.normal(k_x, (batch, input_dim), jnp.float32)

    fwd = jax.jit(functools.partial(
        autoencoder_forward, input_dim=input_dim, hidden_dim=hidden_dim,
        latent_dim=latent_dim, output_dim=output_dim))
    x2_pred, y_pred, y2_pred, reg_loss = fwd(packed, x)
    jax.block_until_ready((x2_pred, y_pred, y2_pred, reg_loss))

    assert x2_pred.shape == (batch, input_dim)
    assert y_pred.shape == (batch, output_dim)
    assert y2_pred.shape == (batch, output_dim)
    assert reg_loss.shape == ()

    # sanity check against a plain-JAX reference (loose tol: TPU matmul precision)
    rx2, ry, ry2, rreg = reference_forward(params, x, l2_reg)
    np.testing.assert_allclose(np.asarray(x2_pred), np.asarray(rx2), rtol=5e-2, atol=5e-2)
    np.testing.assert_allclose(np.asarray(y_pred), np.asarray(ry), rtol=5e-2, atol=5e-2)
    np.testing.assert_allclose(np.asarray(y2_pred), np.asarray(ry2), rtol=5e-2, atol=5e-2)
    np.testing.assert_allclose(np.asarray(reg_loss), np.asarray(rreg), rtol=1e-3, atol=1e-5)

    print("KERNEL_OK")
</pallas_src>

<mosaic_0001>
module attributes {stable_mosaic.version = 11 : i64} {
  func.func @_fused_forward_kernel(%arg0: memref<8x16xf32, #tpu.memory_space<vmem>>, %arg1: memref<368x128xf32, #tpu.memory_space<vmem>>, %arg2: memref<8x128xf32, #tpu.memory_space<vmem>>) attributes {dimension_semantics = [], scalar_prefetch = 0 : i64, scratch_operands = 0 : i64, tpu.core_type = #tpu.core_type<tc>} {
    %c0 = arith.constant 0 : index
    %c0_0 = arith.constant 0 : index
    %0 = vector.load %arg0[%c0, %c0_0] : memref<8x16xf32, #tpu.memory_space<vmem>>, vector<8x16xf32>
    %c0_1 = arith.constant 0 : index
    %c0_2 = arith.constant 0 : index
    %1 = vector.load %arg1[%c0_1, %c0_2] : memref<368x128xf32, #tpu.memory_space<vmem>>, vector<16x128xf32>
    %cst = arith.constant dense<0.000000e+00> : vector<8x128xf32>
    %2 = tpu.matmul %0, %1, %cst {dimension_numbers = #tpu.dot_dimension_numbers<[1], [0], [0], [1], [0, 0, 1, 1], [], []>} : vector<8x16xf32>, vector<16x128xf32>, vector<8x128xf32> -> vector<8x128xf32>
    %c16 = arith.constant 16 : index
    %c0_3 = arith.constant 0 : index
    %3 = vector.load %arg1[%c16, %c0_3] : memref<368x128xf32, #tpu.memory_space<vmem>>, vector<8x128xf32>
    %4 = arith.addf %2, %3 : vector<8x128xf32>
    %cst_4 = arith.constant 0.000000e+00 : f32
    %5 = vector.broadcast %cst_4 : f32 to vector<8x128xf32>
    %6 = arith.maximumf %4, %5 : vector<8x128xf32>
    %7 = vector.extract_strided_slice %6 {offsets = [0, 0], sizes = [8, 32], strides = [1, 1]} : vector<8x128xf32> to vector<8x32xf32>
    %c24 = arith.constant 24 : index
    %c0_5 = arith.constant 0 : index
    %8 = vector.load %arg1[%c24, %c0_5] : memref<368x128xf32, #tpu.memory_space<vmem>>, vector<32x128xf32>
    %cst_6 = arith.constant dense<0.000000e+00> : vector<8x128xf32>
    %9 = tpu.matmul %7, %8, %cst_6 {dimension_numbers = #tpu.dot_dimension_numbers<[1], [0], [0], [1], [0, 0, 1, 1], [], []>} : vector<8x32xf32>, vector<32x128xf32>, vector<8x128xf32> -> vector<8x128xf32>
    %c56 = arith.constant 56 : index
    %c0_7 = arith.constant 0 : index
    %10 = vector.load %arg1[%c56, %c0_7] : memref<368x128xf32, #tpu.memory_space<vmem>>, vector<8x128xf32>
    %11 = arith.addf %9, %10 : vector<8x128xf32>
    %cst_8 = arith.constant 0.000000e+00 : f32
    %12 = vector.broadcast %cst_8 : f32 to vector<8x128xf32>
    %13 = arith.maximumf %11, %12 : vector<8x128xf32>
    %14 = vector.extract_strided_slice %13 {offsets = [0, 0], sizes = [8, 32], strides = [1, 1]} : vector<8x128xf32> to vector<8x32xf32>
    %c64 = arith.constant 64 : index
    %c0_9 = arith.constant 0 : index
    %15 = vector.load %arg1[%c64, %c0_9] : memref<368x128xf32, #tpu.memory_space<vmem>>, vector<32x128xf32>
    %cst_10 = arith.constant dense<0.000000e+00> : vector<8x128xf32>
    %16 = tpu.matmul %14, %15, %cst_10 {dimension_numbers = #tpu.dot_dimension_numbers<[1], [0], [0], [1], [0, 0, 1, 1], [], []>} : vector<8x32xf32>, vector<32x128xf32>, vector<8x128xf32> -> vector<8x128xf32>
    %c96 = arith.constant 96 : index
    %c0_11 = arith.constant 0 : index
    %17 = vector.load %arg1[%c96, %c0_11] : memref<368x128xf32, #tpu.memory_space<vmem>>, vector<8x128xf32>
    %18 = arith.addf %16, %17 : vector<8x128xf32>
    %19 = vector.extract_strided_slice %18 {offsets = [0, 0], sizes = [8, 8], strides = [1, 1]} : vector<8x128xf32> to vector<8x8xf32>
    %c104 = arith.constant 104 : index
    %c0_12 = arith.constant 0 : index
    %20 = vector.load %arg1[%c104, %c0_12] : memref<368x128xf32, #tpu.memory_space<vmem>>, vector<8x128xf32>
    %cst_13 = arith.constant dense<0.000000e+00> : vector<8x128xf32>
    %21 = tpu.matmul %19, %20, %cst_13 {dimension_numbers = #tpu.dot_dimension_numbers<[1], [0], [0], [1], [0, 0, 1, 1], [], []>} : vector<8x8xf32>, vector<8x128xf32>, vector<8x128xf32> -> vector<8x128xf32>
    %c112 = arith.constant 112 : index
    %c0_14 = arith.constant 0 : index
    %22 = vector.load %arg1[%c112, %c0_14] : memref<368x128xf32, #tpu.memory_space<vmem>>, vector<8x128xf32>
    %23 = arith.addf %21, %22 : vector<8x128xf32>
    %cst_15 = arith.constant 0.000000e+00 : f32
    %24 = vector.broadcast %cst_15 : f32 to vector<8x128xf32>
    %25 = arith.maximumf %23, %24 : vector<8x128xf32>
    %26 = vector.extract_strided_slice %25 {offsets = [0, 0], sizes = [8, 64], strides = [1, 1]} : vector<8x128xf32> to vector<8x64xf32>
    %c120 = arith.constant 120 : index
    %c0_16 = arith.constant 0 : index
    %27 = vector.load %arg1[%c120, %c0_16] : memref<368x128xf32, #tpu.memory_space<vmem>>, vector<64x128xf32>
    %cst_17 = arith.constant dense<0.000000e+00> : vector<8x128xf32>
    %28 = tpu.matmul %26, %27, %cst_17 {dimension_numbers = #tpu.dot_dimension_numbers<[1], [0], [0], [1], [0, 0, 1, 1], [], []>} : vector<8x64xf32>, vector<64x128xf32>, vector<8x128xf32> -> vector<8x128xf32>
    %c184 = arith.constant 184 : index
    %c0_18 = arith.constant 0 : index
    %29 = vector.load %arg1[%c184, %c0_18] : memref<368x128xf32, #tpu.memory_space<vmem>>, vector<8x128xf32>
    %30 = arith.addf %28, %29 : vector<8x128xf32>
    %cst_19 = arith.constant 0.000000e+00 : f32
    %31 = vector.broadcast %cst_19 : f32 to vector<8x128xf32>
    %32 = arith.maximumf %30, %31 : vector<8x128xf32>
    %33 = vector.extract_strided_slice %32 {offsets = [0, 0], sizes = [8, 64], strides = [1, 1]} : vector<8x128xf32> to vector<8x64xf32>
    %c192 = arith.constant 192 : index
    %c0_20 = arith.constant 0 : index
    %34 = vector.load %arg1[%c192, %c0_20] : memref<368x128xf32, #tpu.memory_space<vmem>>, vector<64x128xf32>
    %cst_21 = arith.constant dense<0.000000e+00> : vector<8x128xf32>
    %35 = tpu.matmul %33, %34, %cst_21 {dimension_numbers = #tpu.dot_dimension_numbers<[1], [0], [0], [1], [0, 0, 1, 1], [], []>} : vector<8x64xf32>, vector<64x128xf32>, vector<8x128xf32> -> vector<8x128xf32>
    %c256 = arith.constant 256 : index
    %c0_22 = arith.constant 0 : index
    %36 = vector.load %arg1[%c256, %c0_22] : memref<368x128xf32, #tpu.memory_space<vmem>>, vector<8x128xf32>
    %37 = arith.addf %35, %36 : vector<8x128xf32>
    %38 = vector.extract_strided_slice %37 {offsets = [0, 0], sizes = [8, 8], strides = [1, 1]} : vector<8x128xf32> to vector<8x8xf32>
    %c264 = arith.constant 264 : index
    %c0_23 = arith.constant 0 : index
    %39 = vector.load %arg1[%c264, %c0_23] : memref<368x128xf32, #tpu.memory_space<vmem>>, vector<8x128xf32>
    %cst_24 = arith.constant dense<0.000000e+00> : vector<8x128xf32>
    %40 = tpu.matmul %19, %39, %cst_24 {dimension_numbers = #tpu.dot_dimension_numbers<[1], [0], [0], [1], [0, 0, 1, 1], [], []>} : vector<8x8xf32>, vector<8x128xf32>, vector<8x128xf32> -> vector<8x128xf32>
    %c272 = arith.constant 272 : index
    %c0_25 = arith.constant 0 : index
    %41 = vector.load %arg1[%c272, %c0_25] : memref<368x128xf32, #tpu.memory_space<vmem>>, vector<8x128xf32>
    %cst_26 = arith.constant dense<0.000000e+00> : vector<8x128xf32>
    %42 = tpu.matmul %38, %41, %cst_26 {dimension_numbers = #tpu.dot_dimension_numbers<[1], [0], [0], [1], [0, 0, 1, 1], [], []>} : vector<8x8xf32>, vector<8x128xf32>, vector<8x128xf32> -> vector<8x128xf32>
    %43 = arith.addf %40, %42 : vector<8x128xf32>
    %c280 = arith.constant 280 : index
    %c0_27 = arith.constant 0 : index
    %44 = vector.load %arg1[%c280, %c0_27] : memref<368x128xf32, #tpu.memory_space<vmem>>, vector<8x128xf32>
    %45 = arith.addf %43, %44 : vector<8x128xf32>
    %cst_28 = arith.constant 0.000000e+00 : f32
    %46 = vector.broadcast %cst_28 : f32 to vector<8x128xf32>
    %47 = arith.maximumf %45, %46 : vector<8x128xf32>
    %48 = vector.extract_strided_slice %47 {offsets = [0, 0], sizes = [8, 32], strides = [1, 1]} : vector<8x128xf32> to vector<8x32xf32>
    %c288 = arith.constant 288 : index
    %c0_29 = arith.constant 0 : index
    %49 = vector.load %arg1[%c288, %c0_29] : memref<368x128xf32, #tpu.memory_space<vmem>>, vector<32x128xf32>
    %cst_30 = arith.constant dense<0.000000e+00> : vector<8x128xf32>
    %50 = tpu.matmul %48, %49, %cst_30 {dimension_numbers = #tpu.dot_dimension_numbers<[1], [0], [0], [1], [0, 0, 1, 1], [], []>} : vector<8x32xf32>, vector<32x128xf32>, vector<8x128xf32> -> vector<8x128xf32>
    %c320 = arith.constant 320 : index
    %c0_31 = arith.constant 0 : index
    %51 = vector.load %arg1[%c320, %c0_31] : memref<368x128xf32, #tpu.memory_space<vmem>>, vector<8x128xf32>
    %52 = arith.addf %50, %51 : vector<8x128xf32>
    %cst_32 = arith.constant 0.000000e+00 : f32
    %53 = vector.broadcast %cst_32 : f32 to vector<8x128xf32>
    %54 = arith.maximumf %52, %53 : vector<8x128xf32>
    %55 = vector.extract_strided_slice %54 {offsets = [0, 0], sizes = [8, 32], strides = [1, 1]} : vector<8x128xf32> to vector<8x32xf32>
    %c328 = arith.constant 328 : index
    %c0_33 = arith.constant 0 : index
    %56 = vector.load %arg1[%c328, %c0_33] : memref<368x128xf32, #tpu.memory_space<vmem>>, vector<32x128xf32>
    %cst_34 = arith.constant dense<0.000000e+00> : vector<8x128xf32>
    %57 = tpu.matmul %55, %56, %cst_34 {dimension_numbers = #tpu.dot_dimension_numbers<[1], [0], [0], [1], [0, 0, 1, 1], [], []>} : vector<8x32xf32>, vector<32x128xf32>, vector<8x128xf32> -> vector<8x128xf32>
    %c360 = arith.constant 360 : index
    %c0_35 = arith.constant 0 : index
    %58 = vector.load %arg1[%c360, %c0_35] : memref<368x128xf32, #tpu.memory_space<vmem>>, vector<8x128xf32>
    %59 = arith.addf %57, %58 : vector<8x128xf32>
    %60 = arith.addf %37, %59 : vector<8x128xf32>
    %c0_36 = arith.constant 0 : index
    %c0_37 = arith.constant 0 : index
    %61 = vector.load %arg2[%c0_36, %c0_37] : memref<8x128xf32, #tpu.memory_space<vmem>>, vector<8x128xf32>
    tpu.vector_store %arg2[%c0_36, %c0_37], %60 {strides = array<i32>} : memref<8x128xf32, #tpu.memory_space<vmem>>, vector<8x128xf32>,
    return
  }
}

</mosaic_0001>

<llo_original>
// kernel: autoencoder_forward.1
$region0: #{autoencoder_forward.1}
  #allocation0 [shape = 'u32[]', space=smem, size = 0x4, offset = 0x4, fixed_abs, tag = 'smem constant byte address 0x4 - core index']
  #allocation1 [shape = 'u32[144,128]{1,0:T(1,128)}', space=vmem, size = 0x12000, scoped, tag = 'internal scratch']
  %s0 = inlined_call_operand.hbm [shape: f32[8,16], index: 0, kind: input, shape index: {}]
  %s1 = inlined_call_operand.hbm [shape: f32[368,128], index: 1, kind: input, shape index: {}]
  %s2 = inlined_call_operand.vmem [shape: f32[8,128], index: 2, kind: output, shape index: {}]
  %s3 = sld [smem:[#allocation0]]
  $region26: #{autoencoder_forward.1} parent=0
    _
  %s5 = ssub.s32 1, %s3
  %s6 = scalar_select 0, %s5, %s3
  $region1: #{autoencoder_forward.1} parent=0
    #allocation2 [shape = 'u8[4096]{0}', space=vmem, size = 0x1000, scoped, tag = 'input window, operand 0, single buffered']
    #allocation3 [shape = 's32[1]{0}', space=sflag, size = 0x4, scoped, tag = 'scoped memory for autoencoder_forward.1']
    #allocation4 [shape = 'u8[188416]{0}', space=vmem, size = 0x2e000, scoped, tag = 'input window, operand 1, single buffered']
    #allocation5 [shape = 's32[1]{0}', space=sflag, size = 0x4, scoped, tag = 'scoped memory for autoencoder_forward.1']
    %7 = vsyncpa [#allocation3], 0
    %8 = vsyncpa [#allocation5], 0
    // Predicated region
    $region2: #{autoencoder_forward.1} parent=1 // pred_check
      _
    $region3: #{autoencoder_forward.1} parent=1 // pred_check_branch
      %10 = sbr.rel (0) target = $region5
    $region4: #{autoencoder_forward.1} parent=1 // pred_region
      %s12 = ssub.s32 128, 128
      %13 = vsyncadd [#allocation3], %s12
      %s15 = sshll.u32 [#allocation2], 4
      %s16 = int_to_ptr.vmem [resolvable:$true] %s15
      %18 = dma.hbm_to_vmem [thread:$0]  %s0, 128, %s16, [#allocation3]
    $region5: #{autoencoder_forward.1} parent=1 // pred_fallthru
      _
    // Predicated region
    $region6: #{autoencoder_forward.1} parent=1 // pred_check
      _
    $region7: #{autoencoder_forward.1} parent=1 // pred_check_branch
      %20 = sbr.rel (0) target = $region9
    $region8: #{autoencoder_forward.1} parent=1 // pred_region
      %s22 = ssub.s32 5888, 5888
      %23 = vsyncadd [#allocation5], %s22
      %s24 = sshll.u32 [#allocation4], 4
      %s25 = int_to_ptr.vmem [resolvable:$true] %s24
      %30 = dma.hbm_to_vmem [thread:$0]  %s1, 5888, %s25, [#allocation5], 128, 128, 8
    $region9: #{autoencoder_forward.1} parent=1 // pred_fallthru
      _
    // Predicated region
    $region10: #{autoencoder_forward.1} parent=1 // pred_check
      _
    $region11: #{autoencoder_forward.1} parent=1 // pred_check_branch
      %32 = sbr.rel (0) target = $region13
    $region12: #{autoencoder_forward.1} parent=1 // pred_region
      %33 = dma.done [#allocation3], 128
    $region13: #{autoencoder_forward.1} parent=1 // pred_fallthru
      _
    // Predicated region
    $region14: #{autoencoder_forward.1} parent=1 // pred_check
      _
    $region15: #{autoencoder_forward.1} parent=1 // pred_check_branch
      %35 = sbr.rel (0) target = $region17
    $region16: #{autoencoder_forward.1} parent=1 // pred_region
      %36 = dma.done [#allocation5], 5888
    $region17: #{autoencoder_forward.1} parent=1 // pred_fallthru
      _
    %v37 = vld [vmem:[#allocation2] sm:$0xff]
    %v38 = vld [vmem:[#allocation4] sm:$0xff]
    %v39 = vld [vmem:[#allocation4 + $0x8] sm:$0xff]
    %v40 = vld [vmem:[#allocation4 + $0x10] sm:$0xff]
    %vm41 = vcmask 130048
    %v43 = vsel %vm41, %v37, 0
    %45 = vmatprep.subr.mxu0 0.0
    %46 = vmatpush1.msra.mxu0 %v38
    %47 = vmatprep.subr.mxu0 0.0
    %48 = vmatpush1.msra.mxu0 %v39
    %49 = vmatprep.subr.mxu0 0.0
    %50 = vmatpush1.msra.mxu0 0.0
    %51 = vmatprep.subr.mxu0 0.0
    %52 = vmatpush1.msra.mxu0 0.0
    %53 = vmatprep.subr.mxu0 0.0
    %54 = vmatpush1.msra.mxu0 0.0
    %55 = vmatprep.subr.mxu0 0.0
    %56 = vmatpush1.msra.mxu0 0.0
    %57 = vmatprep.subr.mxu0 0.0
    %58 = vmatpush1.msra.mxu0 0.0
    %59 = vmatprep.subr.mxu0 0.0
    %60 = vmatpush1.msra.mxu0 0.0
    %61 = vmatprep.subr.mxu0 0.0
    %62 = vmatpush1.msra.mxu0 0.0
    %63 = vmatprep.subr.mxu0 0.0
    %64 = vmatpush1.msra.mxu0 0.0
    %65 = vmatprep.subr.mxu0 0.0
    %66 = vmatpush1.msra.mxu0 0.0
    %67 = vmatprep.subr.mxu0 0.0
    %68 = vmatpush1.msra.mxu0 0.0
    %69 = vmatprep.subr.mxu0 0.0
    %70 = vmatpush1.msra.mxu0 0.0
    %71 = vmatprep.subr.mxu0 0.0
    %72 = vmatpush1.msra.mxu0 0.0
    %73 = vmatprep.subr.mxu0 0.0
    %74 = vmatpush1.msra.mxu0 0.0
    %75 = vmatprep.subr.mxu0 0.0
    %76 = vmatpush1.msra.mxu0 0.0
    %77 = vmatprep.subr.mxu0 0.0
    %78 = vmatpush1.msra.mxu0 0.0
    %79 = vmatprep.subr.mxu0 0.0
    %80 = vmatpush1.msra.mxu0 0.0
    %81 = vmatprep.subr.mxu0 0.0
    %82 = vmatpush1.msra.mxu0 0.0
    %83 = vmatprep.subr.mxu0 0.0
    %84 = vmatpush1.msra.mxu0 0.0
    %85 = vmatprep.subr.mxu0 0.0
    %86 = vmatpush1.msra.mxu0 0.0
    %87 = vmatprep.subr.mxu0 0.0
    %88 = vmatpush1.msra.mxu0 0.0
    %89 = vmatprep.subr.mxu0 0.0
    %90 = vmatpush1.msra.mxu0 0.0
    %91 = vmatprep.subr.mxu0 0.0
    %92 = vmatpush1.msra.mxu0 0.0
    %93 = vmatprep.subr.mxu0 0.0
    %94 = vmatpush1.msra.mxu0 0.0
    %95 = vmatprep.subr.mxu0 0.0
    %96 = vmatpush1.msra.mxu0 0.0
    %97 = vmatprep.subr.mxu0 0.0
    %98 = vmatpush1.msra.mxu0 0.0
    %99 = vmatprep.subr.mxu0 0.0
    %100 = vmatpush1.msra.mxu0 0.0
    %101 = vmatprep.subr.mxu0 0.0
    %102 = vmatpush1.msra.mxu0 0.0
    %103 = vmatprep.subr.mxu0 0.0
    %104 = vmatpush1.msra.mxu0 0.0
    %105 = vmatprep.subr.mxu0 0.0
    %106 = vmatpush1.msra.mxu0 0.0
    %107 = vmatprep.subr.mxu0 0.0
    %108 = vmatpush1.msra.mxu0 0.0
    %109 = vmatprep.mubr.f32.mxu0 0.0
    %110 = vmatmul.mubr.f32.gmra.mrb[0].mxu0 %v43
    %v111 = vpop.f32.mrb[0].mxu0
    %v112 = vadd.f32 %v40, %v111
    %v113 = vpop.f32.mrb[0].mxu0
    %114 = vdwg.mxu0
    %v115 = vmax.f32 %v112, 0.0
    %v116 = vld [vmem:[#allocation4 + $0x18] sm:$0xff]
    %v117 = vld [vmem:[#allocation4 + $0x20] sm:$0xff]
    %v118 = vld [vmem:[#allocation4 + $0x28] sm:$0xff]
    %v119 = vld [vmem:[#allocation4 + $0x30] sm:$0xff]
    %v120 = vld [vmem:[#allocation4 + $0x38] sm:$0xff]
    %vm121 = vcmask 261120
    %v123 = vsel %vm121, %v115, 0
    %125 = vmatprep.subr.mxu0 0.0
    %126 = vmatpush1.msra.mxu0 %v116
    %127 = vmatprep.subr.mxu0 0.0
    %128 = vmatpush1.msra.mxu0 %v117
    %129 = vmatprep.subr.mxu0 0.0
    %130 = vmatpush1.msra.mxu0 %v118
    %131 = vmatprep.subr.mxu0 0.0
    %132 = vmatpush1.msra.mxu0 %v119
    %133 = vmatprep.subr.mxu0 0.0
    %134 = vmatpush1.msra.mxu0 0.0
    %135 = vmatprep.subr.mxu0 0.0
    %136 = vmatpush1.msra.mxu0 0.0
    %137 = vmatprep.subr.mxu0 0.0
    %138 = vmatpush1.msra.mxu0 0.0
    %139 = vmatprep.subr.mxu0 0.0
    %140 = vmatpush1.msra.mxu0 0.0
    %141 = vmatprep.subr.mxu0 0.0
    %142 = vmatpush1.msra.mxu0 0.0
    %143 = vmatprep.subr.mxu0 0.0
    %144 = vmatpush1.msra.mxu0 0.0
    %145 = vmatprep.subr.mxu0 0.0
    %146 = vmatpush1.msra.mxu0 0.0
    %147 = vmatprep.subr.mxu0 0.0
    %148 = vmatpush1.msra.mxu0 0.0
    %149 = vmatprep.subr.mxu0 0.0
    %150 = vmatpush1.msra.mxu0 0.0
    %151 = vmatprep.subr.mxu0 0.0
    %152 = vmatpush1.msra.mxu0 0.0
    %153 = vmatprep.subr.mxu0 0.0
    %154 = vmatpush1.msra.mxu0 0.0
    %155 = vmatprep.subr.mxu0 0.0
    %156 = vmatpush1.msra.mxu0 0.0
    %157 = vmatprep.subr.mxu0 0.0
    %158 = vmatpush1.msra.mxu0 0.0
    %159 = vmatprep.subr.mxu0 0.0
    %160 = vmatpush1.msra.mxu0 0.0
    %161 = vmatprep.subr.mxu0 0.0
    %162 = vmatpush1.msra.mxu0 0.0
    %163 = vmatprep.subr.mxu0 0.0
    %164 = vmatpush1.msra.mxu0 0.0
    %165 = vmatprep.subr.mxu0 0.0
    %166 = vmatpush1.msra.mxu0 0.0
    %167 = vmatprep.subr.mxu0 0.0
    %168 = vmatpush1.msra.mxu0 0.0
    %169 = vmatprep.subr.mxu0 0.0
    %170 = vmatpush1.msra.mxu0 0.0
    %171 = vmatprep.subr.mxu0 0.0
    %172 = vmatpush1.msra.mxu0 0.0
    %173 = vmatprep.subr.mxu0 0.0
    %174 = vmatpush1.msra.mxu0 0.0
    %175 = vmatprep.subr.mxu0 0.0
    %176 = vmatpush1.msra.mxu0 0.0
    %177 = vmatprep.subr.mxu0 0.0
    %178 = vmatpush1.msra.mxu0 0.0
    %179 = vmatprep.subr.mxu0 0.0
    %180 = vmatpush1.msra.mxu0 0.0
    %181 = vmatprep.subr.mxu0 0.0
    %182 = vmatpush1.msra.mxu0 0.0
    %183 = vmatprep.subr.mxu0 0.0
    %184 = vmatpush1.msra.mxu0 0.0
    %185 = vmatprep.subr.mxu0 0.0
    %186 = vmatpush1.msra.mxu0 0.0
    %187 = vmatprep.subr.mxu0 0.0
    %188 = vmatpush1.msra.mxu0 0.0
    %189 = vmatprep.mubr.f32.mxu0 0.0
    %190 = vmatmul.mubr.f32.gmra.mrb[0].mxu0 %v123
    %v191 = vpop.f32.mrb[0].mxu0
    %v192 = vadd.f32 %v120, %v191
    %v193 = vpop.f32.mrb[0].mxu0
    %194 = vdwg.mxu0
    %v195 = vmax.f32 %v192, 0.0
    %v196 = vld [vmem:[#allocation4 + $0x40] sm:$0xff]
    %v197 = vld [vmem:[#allocation4 + $0x48] sm:$0xff]
    %v198 = vld [vmem:[#allocation4 + $0x50] sm:$0xff]
    %v199 = vld [vmem:[#allocation4 + $0x58] sm:$0xff]
    %v200 = vld [vmem:[#allocation4 + $0x60] sm:$0xff]
    %v202 = vsel %vm121, %v195, 0
    %204 = vmatprep.subr.mxu0 0.0
    %205 = vmatpush1.msra.mxu0 %v196
    %206 = vmatprep.subr.mxu0 0.0
    %207 = vmatpush1.msra.mxu0 %v197
    %208 = vmatprep.subr.mxu0 0.0
    %209 = vmatpush1.msra.mxu0 %v198
    %210 = vmatprep.subr.mxu0 0.0
    %211 = vmatpush1.msra.mxu0 %v199
    %212 = vmatprep.subr.mxu0 0.0
    %213 = vmatpush1.msra.mxu0 0.0
    %214 = vmatprep.subr.mxu0 0.0
    %215 = vmatpush1.msra.mxu0 0.0
    %216 = vmatprep.subr.mxu0 0.0
    %217 = vmatpush1.msra.mxu0 0.0
    %218 = vmatprep.subr.mxu0 0.0
    %219 = vmatpush1.msra.mxu0 0.0
    %220 = vmatprep.subr.mxu0 0.0
    %221 = vmatpush1.msra.mxu0 0.0
    %222 = vmatprep.subr.mxu0 0.0
    %223 = vmatpush1.msra.mxu0 0.0
    %224 = vmatprep.subr.mxu0 0.0
    %225 = vmatpush1.msra.mxu0 0.0
    %226 = vmatprep.subr.mxu0 0.0
    %227 = vmatpush1.msra.mxu0 0.0
    %228 = vmatprep.subr.mxu0 0.0
    %229 = vmatpush1.msra.mxu0 0.0
    %230 = vmatprep.subr.mxu0 0.0
    %231 = vmatpush1.msra.mxu0 0.0
    %232 = vmatprep.subr.mxu0 0.0
    %233 = vmatpush1.msra.mxu0 0.0
    %234 = vmatprep.subr.mxu0 0.0
    %235 = vmatpush1.msra.mxu0 0.0
    %236 = vmatprep.subr.mxu0 0.0
    %237 = vmatpush1.msra.mxu0 0.0
    %238 = vmatprep.subr.mxu0 0.0
    %239 = vmatpush1.msra.mxu0 0.0
    %240 = vmatprep.subr.mxu0 0.0
    %241 = vmatpush1.msra.mxu0 0.0
    %242 = vmatprep.subr.mxu0 0.0
    %243 = vmatpush1.msra.mxu0 0.0
    %244 = vmatprep.subr.mxu0 0.0
    %245 = vmatpush1.msra.mxu0 0.0
    %246 = vmatprep.subr.mxu0 0.0
    %247 = vmatpush1.msra.mxu0 0.0
    %248 = vmatprep.subr.mxu0 0.0
    %249 = vmatpush1.msra.mxu0 0.0
    %250 = vmatprep.subr.mxu0 0.0
    %251 = vmatpush1.msra.mxu0 0.0
    %252 = vmatprep.subr.mxu0 0.0
    %253 = vmatpush1.msra.mxu0 0.0
    %254 = vmatprep.subr.mxu0 0.0
    %255 = vmatpush1.msra.mxu0 0.0
    %256 = vmatprep.subr.mxu0 0.0
    %257 = vmatpush1.msra.mxu0 0.0
    %258 = vmatprep.subr.mxu0 0.0
    %259 = vmatpush1.msra.mxu0 0.0
    %260 = vmatprep.subr.mxu0 0.0
    %261 = vmatpush1.msra.mxu0 0.0
    %262 = vmatprep.subr.mxu0 0.0
    %263 = vmatpush1.msra.mxu0 0.0
    %264 = vmatprep.subr.mxu0 0.0
    %265 = vmatpush1.msra.mxu0 0.0
    %266 = vmatprep.subr.mxu0 0.0
    %267 = vmatpush1.msra.mxu0 0.0
    %268 = vmatprep.mubr.f32.mxu0 0.0
    %269 = vmatmul.mubr.f32.gmra.mrb[0].mxu0 %v202
    %v270 = vpop.f32.mrb[0].mxu0
    %v271 = vadd.f32 %v200, %v270
    %v272 = vpop.f32.mrb[0].mxu0
    %273 = vdwg.mxu0
    %v274 = vld [vmem:[#allocation4 + $0x68] sm:$0xff]
    %v275 = vld [vmem:[#allocation4 + $0x70] sm:$0xff]
    %vm276 = vcmask 64512
    %v278 = vsel %vm276, %v271, 0
    %280 = vmatprep.subr.mxu0 0.0
    %281 = vmatpush1.msra.mxu0 %v274
    %282 = vmatprep.subr.mxu0 0.0
    %283 = vmatpush1.msra.mxu0 0.0
    %284 = vmatprep.subr.mxu0 0.0
    %285 = vmatpush1.msra.mxu0 0.0
    %286 = vmatprep.subr.mxu0 0.0
    %287 = vmatpush1.msra.mxu0 0.0
    %288 = vmatprep.subr.mxu0 0.0
    %289 = vmatpush1.msra.mxu0 0.0
    %290 = vmatprep.subr.mxu0 0.0
    %291 = vmatpush1.msra.mxu0 0.0
    %292 = vmatprep.subr.mxu0 0.0
    %293 = vmatpush1.msra.mxu0 0.0
    %294 = vmatprep.subr.mxu0 0.0
    %295 = vmatpush1.msra.mxu0 0.0
    %296 = vmatprep.subr.mxu0 0.0
    %297 = vmatpush1.msra.mxu0 0.0
    %298 = vmatprep.subr.mxu0 0.0
    %299 = vmatpush1.msra.mxu0 0.0
    %300 = vmatprep.subr.mxu0 0.0
    %301 = vmatpush1.msra.mxu0 0.0
    %302 = vmatprep.subr.mxu0 0.0
    %303 = vmatpush1.msra.mxu0 0.0
    %304 = vmatprep.subr.mxu0 0.0
    %305 = vmatpush1.msra.mxu0 0.0
    %306 = vmatprep.subr.mxu0 0.0
    %307 = vmatpush1.msra.mxu0 0.0
    %308 = vmatprep.subr.mxu0 0.0
    %309 = vmatpush1.msra.mxu0 0.0
    %310 = vmatprep.subr.mxu0 0.0
    %311 = vmatpush1.msra.mxu0 0.0
    %312 = vmatprep.subr.mxu0 0.0
    %313 = vmatpush1.msra.mxu0 0.0
    %314 = vmatprep.subr.mxu0 0.0
    %315 = vmatpush1.msra.mxu0 0.0
    %316 = vmatprep.subr.mxu0 0.0
    %317 = vmatpush1.msra.mxu0 0.0
    %318 = vmatprep.subr.mxu0 0.0
    %319 = vmatpush1.msra.mxu0 0.0
    %320 = vmatprep.subr.mxu0 0.0
    %321 = vmatpush1.msra.mxu0 0.0
    %322 = vmatprep.subr.mxu0 0.0
    %323 = vmatpush1.msra.mxu0 0.0
    %324 = vmatprep.subr.mxu0 0.0
    %325 = vmatpush1.msra.mxu0 0.0
    %326 = vmatprep.subr.mxu0 0.0
    %327 = vmatpush1.msra.mxu0 0.0
    %328 = vmatprep.subr.mxu0 0.0
    %329 = vmatpush1.msra.mxu0 0.0
    %330 = vmatprep.subr.mxu0 0.0
    %331 = vmatpush1.msra.mxu0 0.0
    %332 = vmatprep.subr.mxu0 0.0
    %333 = vmatpush1.msra.mxu0 0.0
    %334 = vmatprep.subr.mxu0 0.0
    %335 = vmatpush1.msra.mxu0 0.0
    %336 = vmatprep.subr.mxu0 0.0
    %337 = vmatpush1.msra.mxu0 0.0
    %338 = vmatprep.subr.mxu0 0.0
    %339 = vmatpush1.msra.mxu0 0.0
    %340 = vmatprep.subr.mxu0 0.0
    %341 = vmatpush1.msra.mxu0 0.0
    %342 = vmatprep.subr.mxu0 0.0
    %343 = vmatpush1.msra.mxu0 0.0
    %344 = vmatprep.mubr.f32.mxu0 0.0
    %345 = vmatmul.mubr.f32.gmra.mrb[0].mxu0 %v278
    %v346 = vpop.f32.mrb[0].mxu0
    %v347 = vadd.f32 %v275, %v346
    %v348 = vpop.f32.mrb[0].mxu0
    %349 = vdwg.mxu0
    %v350 = vmax.f32 %v347, 0.0
    %v351 = vld [vmem:[#allocation4 + $0x78] sm:$0xff]
    %v352 = vld [vmem:[#allocation4 + $0x80] sm:$0xff]
    %v353 = vld [vmem:[#allocation4 + $0x88] sm:$0xff]
    %v354 = vld [vmem:[#allocation4 + $0x90] sm:$0xff]
    %v355 = vld [vmem:[#allocation4 + $0x98] sm:$0xff]
    %v356 = vld [vmem:[#allocation4 + $0xa0] sm:$0xff]
    %v357 = vld [vmem:[#allocation4 + $0xa8] sm:$0xff]
    %v358 = vld [vmem:[#allocation4 + $0xb0] sm:$0xff]
    %v359 = vld [vmem:[#allocation4 + $0xb8] sm:$0xff]
    %vm360 = vcmask 523264
    %v362 = vsel %vm360, %v350, 0
    %364 = vmatprep.subr.mxu0 0.0
    %365 = vmatpush1.msra.mxu0 %v351
    %366 = vmatprep.subr.mxu0 0.0
    %367 = vmatpush1.msra.mxu0 %v352
    %368 = vmatprep.subr.mxu0 0.0
    %369 = vmatpush1.msra.mxu0 %v353
    %370 = vmatprep.subr.mxu0 0.0
    %371 = vmatpush1.msra.mxu0 %v354
    %372 = vmatprep.subr.mxu0 0.0
    %373 = vmatpush1.msra.mxu0 %v355
    %374 = vmatprep.subr.mxu0 0.0
    %375 = vmatpush1.msra.mxu0 %v356
    %376 = vmatprep.subr.mxu0 0.0
    %377 = vmatpush1.msra.mxu0 %v357
    %378 = vmatprep.subr.mxu0 0.0
    %379 = vmatpush1.msra.mxu0 %v358
    %380 = vmatprep.subr.mxu0 0.0
    %381 = vmatpush1.msra.mxu0 0.0
    %382 = vmatprep.subr.mxu0 0.0
    %383 = vmatpush1.msra.mxu0 0.0
    %384 = vmatprep.subr.mxu0 0.0
    %385 = vmatpush1.msra.mxu0 0.0
    %386 = vmatprep.subr.mxu0 0.0
    %387 = vmatpush1.msra.mxu0 0.0
    %388 = vmatprep.subr.mxu0 0.0
    %389 = vmatpush1.msra.mxu0 0.0
    %390 = vmatprep.subr.mxu0 0.0
    %391 = vmatpush1.msra.mxu0 0.0
    %392 = vmatprep.subr.mxu0 0.0
    %393 = vmatpush1.msra.mxu0 0.0
    %394 = vmatprep.subr.mxu0 0.0
    %395 = vmatpush1.msra.mxu0 0.0
    %396 = vmatprep.subr.mxu0 0.0
    %397 = vmatpush1.msra.mxu0 0.0
    %398 = vmatprep.subr.mxu0 0.0
    %399 = vmatpush1.msra.mxu0 0.0
    %400 = vmatprep.subr.mxu0 0.0
    %401 = vmatpush1.msra.mxu0 0.0
    %402 = vmatprep.subr.mxu0 0.0
    %403 = vmatpush1.msra.mxu0 0.0
    %404 = vmatprep.subr.mxu0 0.0
    %405 = vmatpush1.msra.mxu0 0.0
    %406 = vmatprep.subr.mxu0 0.0
    %407 = vmatpush1.msra.mxu0 0.0
    %408 = vmatprep.subr.mxu0 0.0
    %409 = vmatpush1.msra.mxu0 0.0
    %410 = vmatprep.subr.mxu0 0.0
    %411 = vmatpush1.msra.mxu0 0.0
    %412 = vmatprep.subr.mxu0 0.0
    %413 = vmatpush1.msra.mxu0 0.0
    %414 = vmatprep.subr.mxu0 0.0
    %415 = vmatpush1.msra.mxu0 0.0
    %416 = vmatprep.subr.mxu0 0.0
    %417 = vmatpush1.msra.mxu0 0.0
    %418 = vmatprep.subr.mxu0 0.0
    %419 = vmatpush1.msra.mxu0 0.0
    %420 = vmatprep.subr.mxu0 0.0
    %421 = vmatpush1.msra.mxu0 0.0
    %422 = vmatprep.subr.mxu0 0.0
    %423 = vmatpush1.msra.mxu0 0.0
    %424 = vmatprep.subr.mxu0 0.0
    %425 = vmatpush1.msra.mxu0 0.0
    %426 = vmatprep.subr.mxu0 0.0
    %427 = vmatpush1.msra.mxu0 0.0
    %428 = vmatprep.mubr.f32.mxu0 0.0
    %429 = vmatmul.mubr.f32.gmra.mrb[0].mxu0 %v362
    %v430 = vpop.f32.mrb[0].mxu0
    %v431 = vadd.f32 %v359, %v430
    %v432 = vpop.f32.mrb[0].mxu0
    %433 = vdwg.mxu0
    %v434 = vmax.f32 %v431, 0.0
    %v435 = vld [vmem:[#allocation4 + $0xc0] sm:$0xff]
    %v436 = vld [vmem:[#allocation4 + $0xc8] sm:$0xff]
    %v437 = vld [vmem:[#allocation4 + $0xd0] sm:$0xff]
    %v438 = vld [vmem:[#allocation4 + $0xd8] sm:$0xff]
    %v439 = vld [vmem:[#allocation4 + $0xe0] sm:$0xff]
    %v440 = vld [vmem:[#allocation4 + $0xe8] sm:$0xff]
    %v441 = vld [vmem:[#allocation4 + $0xf0] sm:$0xff]
    %v442 = vld [vmem:[#allocation4 + $0xf8] sm:$0xff]
    %v443 = vld [vmem:[#allocation4 + $0x100] sm:$0xff]
    %v445 = vsel %vm360, %v434, 0
    %447 = vmatprep.subr.mxu0 0.0
    %448 = vmatpush1.msra.mxu0 %v435
    %449 = vmatprep.subr.mxu0 0.0
    %450 = vmatpush1.msra.mxu0 %v436
    %451 = vmatprep.subr.mxu0 0.0
    %452 = vmatpush1.msra.mxu0 %v437
    %453 = vmatprep.subr.mxu0 0.0
    %454 = vmatpush1.msra.mxu0 %v438
    %455 = vmatprep.subr.mxu0 0.0
    %456 = vmatpush1.msra.mxu0 %v439
    %457 = vmatprep.subr.mxu0 0.0
    %458 = vmatpush1.msra.mxu0 %v440
    %459 = vmatprep.subr.mxu0 0.0
    %460 = vmatpush1.msra.mxu0 %v441
    %461 = vmatprep.subr.mxu0 0.0
    %462 = vmatpush1.msra.mxu0 %v442
    %463 = vmatprep.subr.mxu0 0.0
    %464 = vmatpush1.msra.mxu0 0.0
    %465 = vmatprep.subr.mxu0 0.0
    %466 = vmatpush1.msra.mxu0 0.0
    %467 = vmatprep.subr.mxu0 0.0
    %468 = vmatpush1.msra.mxu0 0.0
    %469 = vmatprep.subr.mxu0 0.0
    %470 = vmatpush1.msra.mxu0 0.0
    %471 = vmatprep.subr.mxu0 0.0
    %472 = vmatpush1.msra.mxu0 0.0
    %473 = vmatprep.subr.mxu0 0.0
    %474 = vmatpush1.msra.mxu0 0.0
    %475 = vmatprep.subr.mxu0 0.0
    %476 = vmatpush1.msra.mxu0 0.0
    %477 = vmatprep.subr.mxu0 0.0
    %478 = vmatpush1.msra.mxu0 0.0
    %479 = vmatprep.subr.mxu0 0.0
    %480 = vmatpush1.msra.mxu0 0.0
    %481 = vmatprep.subr.mxu0 0.0
    %482 = vmatpush1.msra.mxu0 0.0
    %483 = vmatprep.subr.mxu0 0.0
    %484 = vmatpush1.msra.mxu0 0.0
    %485 = vmatprep.subr.mxu0 0.0
    %486 = vmatpush1.msra.mxu0 0.0
    %487 = vmatprep.subr.mxu0 0.0
    %488 = vmatpush1.msra.mxu0 0.0
    %489 = vmatprep.subr.mxu0 0.0
    %490 = vmatpush1.msra.mxu0 0.0
    %491 = vmatprep.subr.mxu0 0.0
    %492 = vmatpush1.msra.mxu0 0.0
    %493 = vmatprep.subr.mxu0 0.0
    %494 = vmatpush1.msra.mxu0 0.0
    %495 = vmatprep.subr.mxu0 0.0
    %496 = vmatpush1.msra.mxu0 0.0
    %497 = vmatprep.subr.mxu0 0.0
    %498 = vmatpush1.msra.mxu0 0.0
    %499 = vmatprep.subr.mxu0 0.0
    %500 = vmatpush1.msra.mxu0 0.0
    %501 = vmatprep.subr.mxu0 0.0
    %502 = vmatpush1.msra.mxu0 0.0
    %503 = vmatprep.subr.mxu0 0.0
    %504 = vmatpush1.msra.mxu0 0.0
    %505 = vmatprep.subr.mxu0 0.0
    %506 = vmatpush1.msra.mxu0 0.0
    %507 = vmatprep.subr.mxu0 0.0
    %508 = vmatpush1.msra.mxu0 0.0
    %509 = vmatprep.subr.mxu0 0.0
    %510 = vmatpush1.msra.mxu0 0.0
    %511 = vmatprep.mubr.f32.mxu0 0.0
    %512 = vmatmul.mubr.f32.gmra.mrb[0].mxu0 %v445
    %v513 = vpop.f32.mrb[0].mxu0
    %v514 = vadd.f32 %v443, %v513
    %v515 = vpop.f32.mrb[0].mxu0
    %516 = vdwg.mxu0
    %v517 = vld [vmem:[#allocation4 + $0x108] sm:$0xff]
    %v518 = vld [vmem:[#allocation4 + $0x110] sm:$0xff]
    %v520 = vsel %vm276, %v514, 0
    %522 = vmatprep.subr.mxu0 0.0
    %523 = vmatpush1.msra.mxu0 %v518
    %524 = vmatprep.subr.mxu0 0.0
    %525 = vmatpush1.msra.mxu0 0.0
    %526 = vmatprep.subr.mxu0 0.0
    %527 = vmatpush1.msra.mxu0 0.0
    %528 = vmatprep.subr.mxu0 0.0
    %529 = vmatpush1.msra.mxu0 0.0
    %530 = vmatprep.subr.mxu0 0.0
    %531 = vmatpush1.msra.mxu0 0.0
    %532 = vmatprep.subr.mxu0 0.0
    %533 = vmatpush1.msra.mxu0 0.0
    %534 = vmatprep.subr.mxu0 0.0
    %535 = vmatpush1.msra.mxu0 0.0
    %536 = vmatprep.subr.mxu0 0.0
    %537 = vmatpush1.msra.mxu0 0.0
    %538 = vmatprep.subr.mxu0 0.0
    %539 = vmatpush1.msra.mxu0 0.0
    %540 = vmatprep.subr.mxu0 0.0
    %541 = vmatpush1.msra.mxu0 0.0
    %542 = vmatprep.subr.mxu0 0.0
    %543 = vmatpush1.msra.mxu0 0.0
    %544 = vmatprep.subr.mxu0 0.0
    %545 = vmatpush1.msra.mxu0 0.0
    %546 = vmatprep.subr.mxu0 0.0
    %547 = vmatpush1.msra.mxu0 0.0
    %548 = vmatprep.subr.mxu0 0.0
    %549 = vmatpush1.msra.mxu0 0.0
    %550 = vmatprep.subr.mxu0 0.0
    %551 = vmatpush1.msra.mxu0 0.0
    %552 = vmatprep.subr.mxu0 0.0
    %553 = vmatpush1.msra.mxu0 0.0
    %554 = vmatprep.subr.mxu0 0.0
    %555 = vmatpush1.msra.mxu0 0.0
    %556 = vmatprep.subr.mxu0 0.0
    %557 = vmatpush1.msra.mxu0 0.0
    %558 = vmatprep.subr.mxu0 0.0
    %559 = vmatpush1.msra.mxu0 0.0
    %560 = vmatprep.subr.mxu0 0.0
    %561 = vmatpush1.msra.mxu0 0.0
    %562 = vmatprep.subr.mxu0 0.0
    %563 = vmatpush1.msra.mxu0 0.0
    %564 = vmatprep.subr.mxu0 0.0
    %565 = vmatpush1.msra.mxu0 0.0
    %566 = vmatprep.subr.mxu0 0.0
    %567 = vmatpush1.msra.mxu0 0.0
    %568 = vmatprep.subr.mxu0 0.0
    %569 = vmatpush1.msra.mxu0 0.0
    %570 = vmatprep.subr.mxu0 0.0
    %571 = vmatpush1.msra.mxu0 0.0
    %572 = vmatprep.subr.mxu0 0.0
    %573 = vmatpush1.msra.mxu0 0.0
    %574 = vmatprep.subr.mxu0 0.0
    %575 = vmatpush1.msra.mxu0 0.0
    %576 = vmatprep.subr.mxu0 0.0
    %577 = vmatpush1.msra.mxu0 0.0
    %578 = vmatprep.subr.mxu0 0.0
    %579 = vmatpush1.msra.mxu0 0.0
    %580 = vmatprep.subr.mxu0 0.0
    %581 = vmatpush1.msra.mxu0 0.0
    %582 = vmatprep.subr.mxu0 0.0
    %583 = vmatpush1.msra.mxu0 0.0
    %584 = vmatprep.subr.mxu0 0.0
    %585 = vmatpush1.msra.mxu0 0.0
    %586 = vmatprep.mubr.f32.mxu0 0.0
    %587 = vmatmul.mubr.f32.gmra.mrb[0].mxu0 %v520
    %v588 = vpop.f32.mrb[0].mxu0
    %v589 = vadd.f32 0.0, %v588
    %v590 = vpop.f32.mrb[0].mxu0
    %591 = vdwg.mxu0
    %592 = vmatprep.subr.mxu0 0.0
    %593 = vmatpush1.msra.mxu0 %v517
    %594 = vmatprep.subr.mxu0 0.0
    %595 = vmatpush1.msra.mxu0 0.0
    %596 = vmatprep.subr.mxu0 0.0
    %597 = vmatpush1.msra.mxu0 0.0
    %598 = vmatprep.subr.mxu0 0.0
    %599 = vmatpush1.msra.mxu0 0.0
    %600 = vmatprep.subr.mxu0 0.0
    %601 = vmatpush1.msra.mxu0 0.0
    %602 = vmatprep.subr.mxu0 0.0
    %603 = vmatpush1.msra.mxu0 0.0
    %604 = vmatprep.subr.mxu0 0.0
    %605 = vmatpush1.msra.mxu0 0.0
    %606 = vmatprep.subr.mxu0 0.0
    %607 = vmatpush1.msra.mxu0 0.0
    %608 = vmatprep.subr.mxu0 0.0
    %609 = vmatpush1.msra.mxu0 0.0
    %610 = vmatprep.subr.mxu0 0.0
    %611 = vmatpush1.msra.mxu0 0.0
    %612 = vmatprep.subr.mxu0 0.0
    %613 = vmatpush1.msra.mxu0 0.0
    %614 = vmatprep.subr.mxu0 0.0
    %615 = vmatpush1.msra.mxu0 0.0
    %616 = vmatprep.subr.mxu0 0.0
    %617 = vmatpush1.msra.mxu0 0.0
    %618 = vmatprep.subr.mxu0 0.0
    %619 = vmatpush1.msra.mxu0 0.0
    %620 = vmatprep.subr.mxu0 0.0
    %621 = vmatpush1.msra.mxu0 0.0
    %622 = vmatprep.subr.mxu0 0.0
    %623 = vmatpush1.msra.mxu0 0.0
    %624 = vmatprep.subr.mxu0 0.0
    %625 = vmatpush1.msra.mxu0 0.0
    %626 = vmatprep.subr.mxu0 0.0
    %627 = vmatpush1.msra.mxu0 0.0
    %628 = vmatprep.subr.mxu0 0.0
    %629 = vmatpush1.msra.mxu0 0.0
    %630 = vmatprep.subr.mxu0 0.0
    %631 = vmatpush1.msra.mxu0 0.0
    %632 = vmatprep.subr.mxu0 0.0
    %633 = vmatpush1.msra.mxu0 0.0
    %634 = vmatprep.subr.mxu0 0.0
    %635 = vmatpush1.msra.mxu0 0.0
    %636 = vmatprep.subr.mxu0 0.0
    %637 = vmatpush1.msra.mxu0 0.0
    %638 = vmatprep.subr.mxu0 0.0
    %639 = vmatpush1.msra.mxu0 0.0
    %640 = vmatprep.subr.mxu0 0.0
    %641 = vmatpush1.msra.mxu0 0.0
    %642 = vmatprep.subr.mxu0 0.0
    %643 = vmatpush1.msra.mxu0 0.0
    %644 = vmatprep.subr.mxu0 0.0
    %645 = vmatpush1.msra.mxu0 0.0
    %646 = vmatprep.subr.mxu0 0.0
    %647 = vmatpush1.msra.mxu0 0.0
    %648 = vmatprep.subr.mxu0 0.0
    %649 = vmatpush1.msra.mxu0 0.0
    %650 = vmatprep.subr.mxu0 0.0
    %651 = vmatpush1.msra.mxu0 0.0
    %652 = vmatprep.subr.mxu0 0.0
    %653 = vmatpush1.msra.mxu0 0.0
    %654 = vmatprep.subr.mxu0 0.0
    %655 = vmatpush1.msra.mxu0 0.0
    %656 = vmatprep.mubr.f32.mxu0 0.0
    %657 = vmatmul.mubr.f32.gmra.mrb[0].mxu0 %v278
    %v658 = vpop.f32.mrb[0].mxu0
    %v659 = vadd.f32 %v589, %v658
    %v660 = vpop.f32.mrb[0].mxu0
    %661 = vdwg.mxu0
    %v662 = vld [vmem:[#allocation4 + $0x118] sm:$0xff]
    %v663 = vadd.f32 %v659, %v662
    %v664 = vmax.f32 %v663, 0.0
    %v665 = vld [vmem:[#allocation4 + $0x120] sm:$0xff]
    %v666 = vld [vmem:[#allocation4 + $0x128] sm:$0xff]
    %v667 = vld [vmem:[#allocation4 + $0x130] sm:$0xff]
    %v668 = vld [vmem:[#allocation4 + $0x138] sm:$0xff]
    %v669 = vld [vmem:[#allocation4 + $0x140] sm:$0xff]
    %v671 = vsel %vm121, %v664, 0
    %673 = vmatprep.subr.mxu0 0.0
    %674 = vmatpush1.msra.mxu0 %v665
    %675 = vmatprep.subr.mxu0 0.0
    %676 = vmatpush1.msra.mxu0 %v666
    %677 = vmatprep.subr.mxu0 0.0
    %678 = vmatpush1.msra.mxu0 %v667
    %679 = vmatprep.subr.mxu0 0.0
    %680 = vmatpush1.msra.mxu0 %v668
    %681 = vmatprep.subr.mxu0 0.0
    %682 = vmatpush1.msra.mxu0 0.0
    %683 = vmatprep.subr.mxu0 0.0
    %684 = vmatpush1.msra.mxu0 0.0
    %685 = vmatprep.subr.mxu0 0.0
    %686 = vmatpush1.msra.mxu0 0.0
    %687 = vmatprep.subr.mxu0 0.0
    %688 = vmatpush1.msra.mxu0 0.0
    %689 = vmatprep.subr.mxu0 0.0
    %690 = vmatpush1.msra.mxu0 0.0
    %691 = vmatprep.subr.mxu0 0.0
    %692 = vmatpush1.msra.mxu0 0.0
    %693 = vmatprep.subr.mxu0 0.0
    %694 = vmatpush1.msra.mxu0 0.0
    %695 = vmatprep.subr.mxu0 0.0
    %696 = vmatpush1.msra.mxu0 0.0
    %697 = vmatprep.subr.mxu0 0.0
    %698 = vmatpush1.msra.mxu0 0.0
    %699 = vmatprep.subr.mxu0 0.0
    %700 = vmatpush1.msra.mxu0 0.0
    %701 = vmatprep.subr.mxu0 0.0
    %702 = vmatpush1.msra.mxu0 0.0
    %703 = vmatprep.subr.mxu0 0.0
    %704 = vmatpush1.msra.mxu0 0.0
    %705 = vmatprep.subr.mxu0 0.0
    %706 = vmatpush1.msra.mxu0 0.0
    %707 = vmatprep.subr.mxu0 0.0
    %708 = vmatpush1.msra.mxu0 0.0
    %709 = vmatprep.subr.mxu0 0.0
    %710 = vmatpush1.msra.mxu0 0.0
    %711 = vmatprep.subr.mxu0 0.0
    %712 = vmatpush1.msra.mxu0 0.0
    %713 = vmatprep.subr.mxu0 0.0
    %714 = vmatpush1.msra.mxu0 0.0
    %715 = vmatprep.subr.mxu0 0.0
    %716 = vmatpush1.msra.mxu0 0.0
    %717 = vmatprep.subr.mxu0 0.0
    %718 = vmatpush1.msra.mxu0 0.0
    %719 = vmatprep.subr.mxu0 0.0
    %720 = vmatpush1.msra.mxu0 0.0
    %721 = vmatprep.subr.mxu0 0.0
    %722 = vmatpush1.msra.mxu0 0.0
    %723 = vmatprep.subr.mxu0 0.0
    %724 = vmatpush1.msra.mxu0 0.0
    %725 = vmatprep.subr.mxu0 0.0
    %726 = vmatpush1.msra.mxu0 0.0
    %727 = vmatprep.subr.mxu0 0.0
    %728 = vmatpush1.msra.mxu0 0.0
    %729 = vmatprep.subr.mxu0 0.0
    %730 = vmatpush1.msra.mxu0 0.0
    %731 = vmatprep.subr.mxu0 0.0
    %732 = vmatpush1.msra.mxu0 0.0
    %733 = vmatprep.subr.mxu0 0.0
    %734 = vmatpush1.msra.mxu0 0.0
    %735 = vmatprep.subr.mxu0 0.0
    %736 = vmatpush1.msra.mxu0 0.0
    %737 = vmatprep.mubr.f32.mxu0 0.0
    %738 = vmatmul.mubr.f32.gmra.mrb[0].mxu0 %v671
    %v739 = vpop.f32.mrb[0].mxu0
    %v740 = vadd.f32 %v669, %v739
    %v741 = vpop.f32.mrb[0].mxu0
    %742 = vdwg.mxu0
    %v743 = vmax.f32 %v740, 0.0
    %v744 = vld [vmem:[#allocation4 + $0x148] sm:$0xff]
    %v745 = vld [vmem:[#allocation4 + $0x150] sm:$0xff]
    %v746 = vld [vmem:[#allocation4 + $0x158] sm:$0xff]
    %v747 = vld [vmem:[#allocation4 + $0x160] sm:$0xff]
    %v748 = vld [vmem:[#allocation4 + $0x168] sm:$0xff]
    %v750 = vsel %vm121, %v743, 0
    %752 = vmatprep.subr.mxu0 0.0
    %753 = vmatpush1.msra.mxu0 %v744
    %754 = vmatprep.subr.mxu0 0.0
    %755 = vmatpush1.msra.mxu0 %v745
    %756 = vmatprep.subr.mxu0 0.0
    %757 = vmatpush1.msra.mxu0 %v746
    %758 = vmatprep.subr.mxu0 0.0
    %759 = vmatpush1.msra.mxu0 %v747
    %760 = vmatprep.subr.mxu0 0.0
    %761 = vmatpush1.msra.mxu0 0.0
    %762 = vmatprep.subr.mxu0 0.0
    %763 = vmatpush1.msra.mxu0 0.0
    %764 = vmatprep.subr.mxu0 0.0
    %765 = vmatpush1.msra.mxu0 0.0
    %766 = vmatprep.subr.mxu0 0.0
    %767 = vmatpush1.msra.mxu0 0.0
    %768 = vmatprep.subr.mxu0 0.0
    %769 = vmatpush1.msra.mxu0 0.0
    %770 = vmatprep.subr.mxu0 0.0
    %771 = vmatpush1.msra.mxu0 0.0
    %772 = vmatprep.subr.mxu0 0.0
    %773 = vmatpush1.msra.mxu0 0.0
    %774 = vmatprep.subr.mxu0 0.0
    %775 = vmatpush1.msra.mxu0 0.0
    %776 = vmatprep.subr.mxu0 0.0
    %777 = vmatpush1.msra.mxu0 0.0
    %778 = vmatprep.subr.mxu0 0.0
    %779 = vmatpush1.msra.mxu0 0.0
    %780 = vmatprep.subr.mxu0 0.0
    %781 = vmatpush1.msra.mxu0 0.0
    %782 = vmatprep.subr.mxu0 0.0
    %783 = vmatpush1.msra.mxu0 0.0
    %784 = vmatprep.subr.mxu0 0.0
    %785 = vmatpush1.msra.mxu0 0.0
    %786 = vmatprep.subr.mxu0 0.0
    %787 = vmatpush1.msra.mxu0 0.0
    %788 = vmatprep.subr.mxu0 0.0
    %789 = vmatpush1.msra.mxu0 0.0
    %790 = vmatprep.subr.mxu0 0.0
    %791 = vmatpush1.msra.mxu0 0.0
    %792 = vmatprep.subr.mxu0 0.0
    %793 = vmatpush1.msra.mxu0 0.0
    %794 = vmatprep.subr.mxu0 0.0
    %795 = vmatpush1.msra.mxu0 0.0
    %796 = vmatprep.subr.mxu0 0.0
    %797 = vmatpush1.msra.mxu0 0.0
    %798 = vmatprep.subr.mxu0 0.0
    %799 = vmatpush1.msra.mxu0 0.0
    %800 = vmatprep.subr.mxu0 0.0
    %801 = vmatpush1.msra.mxu0 0.0
    %802 = vmatprep.subr.mxu0 0.0
    %803 = vmatpush1.msra.mxu0 0.0
    %804 = vmatprep.subr.mxu0 0.0
    %805 = vmatpush1.msra.mxu0 0.0
    %806 = vmatprep.subr.mxu0 0.0
    %807 = vmatpush1.msra.mxu0 0.0
    %808 = vmatprep.subr.mxu0 0.0
    %809 = vmatpush1.msra.mxu0 0.0
    %810 = vmatprep.subr.mxu0 0.0
    %811 = vmatpush1.msra.mxu0 0.0
    %812 = vmatprep.subr.mxu0 0.0
    %813 = vmatpush1.msra.mxu0 0.0
    %814 = vmatprep.subr.mxu0 0.0
    %815 = vmatpush1.msra.mxu0 0.0
    %816 = vmatprep.mubr.f32.mxu0 0.0
    %817 = vmatmul.mubr.f32.gmra.mrb[0].mxu0 %v750
    %v818 = vpop.f32.mrb[0].mxu0
    %v819 = vadd.f32 %v748, %v818
    %v820 = vpop.f32.mrb[0].mxu0
    %821 = vdwg.mxu0
    %v822 = vadd.f32 %v514, %v819
    %823 = vst [vmem:[%s2] sm:$0xff] %v822
    // Predicated region
    $region18: #{autoencoder_forward.1} parent=1 // pred_check
      _
    $region19: #{autoencoder_forward.1} parent=1 // pred_check_branch
      %825 = sbr.rel (0) target = $region21
    $region20: #{autoencoder_forward.1} parent=1 // pred_region
      _
    $region21: #{autoencoder_forward.1} parent=1 // pred_fallthru
      _
    // Predicated region
    $region22: #{autoencoder_forward.1} parent=1 // pred_check
      _
    $region23: #{autoencoder_forward.1} parent=1 // pred_check_branch
      %827 = sbr.rel (0) target = $region25
    $region24: #{autoencoder_forward.1} parent=1 // pred_region
      _
    $region25: #{autoencoder_forward.1} parent=1 // pred_fallthru
      _
    %828 = vsyncpa [#allocation3], 1
    %829 = vsyncpa [#allocation5], 1

</llo_original>
